<compile_context>
chip_gen: v7x
topology: tpu7x:2x2x1
jax: 0.10.0
libtpu: 0.0.40
codegen_flags: <defaults>
</compile_context>

<pallas_src>
import functools
import math

import jax
import jax.numpy as jnp
from jax import lax
from jax.experimental import pallas as pl
from jax.experimental.pallas import tpu as pltpu


_VMEM_LIMIT_BYTES = 32 * 1024 * 1024  # scoped VMEM; fits v5e/v6e/v7x


def _round_down8(n: int) -> int:
    return max(8, (n // 8) * 8)


def _row_tile(rows: int, preferred: int, bytes_per_row: int, budget_bytes: int) -> int:
    """Row tile obeying the (8,128) rule: full extent, or a multiple of 8,
    capped so the (double-buffered) tiles fit the VMEM budget."""
    cap = max(8, budget_bytes // max(bytes_per_row, 1))
    tile = _round_down8(min(preferred, cap))
    return rows if rows <= tile else tile


def _fused_kernel(inv_freq_ref, odd_ref, x_ref, ox_ref, pe_ref, *,
                  xscale: float, seq_len: int, pe_tile: int,
                  n_x: int, n_pe: int, grid_n: int):
    i = pl.program_id(0)

    def scale_body():
        # Native-dtype multiply (python-float scalar is weakly typed): bf16 in
        # stays bf16 on v6e/v7x; f32 stays f32.
        ox_ref[...] = x_ref[...] * xscale

    def pe_body():
        # Rows of this pe tile cover j = i*pe_tile .. ; rel position runs
        # T-1 .. -(T-1) over the full table.
        row0 = (i * pe_tile).astype(jnp.float32)
        local = lax.broadcasted_iota(jnp.int32, (pe_tile, 1), 0).astype(jnp.float32)
        rel = jnp.float32(seq_len - 1) - row0 - local              # (pt, 1)
        angle = rel * inv_freq_ref[...]                            # (pt, D)
        vals = jnp.where(odd_ref[...] != 0.0, jnp.cos(angle), jnp.sin(angle))
        pe_ref[...] = vals.astype(pe_ref.dtype)

    # Gate only when this output has fewer blocks than the grid (clamped tail
    # steps must not touch the resident block).
    if n_x < grid_n:
        pl.when(i < n_x)(scale_body)
    else:
        scale_body()
    if n_pe < grid_n:
        pl.when(i < n_pe)(pe_body)
    else:
        pe_body()


def rel_positional_encoding(x: jax.Array, d_model: int, *, row_tile_hint: int = 1024):
    """x: (batch, time, d_model) -> (x * sqrt(d_model), pos_emb (1, 2*time-1, d_model)).

    d_model must be even; for lane-dense (unmasked) stores it should be a
    multiple of 128.
    """
    B, T, D = x.shape
    assert D == d_model and D % 2 == 0
    L = 2 * T - 1
    xscale = float(math.sqrt(d_model))
    rows = B * T
    itemsize = jnp.dtype(x.dtype).itemsize

    # Channel-only tables, computed once outside the grid (hoisted):
    #   inv_freq[c] = 10000^(-2*(c//2)/D)   (same value for the sin/cos pair)
    #   odd[c]      = 1.0 for cos channels (odd c), else 0.0
    ch = jnp.arange(D, dtype=jnp.int32)
    inv_freq = jnp.exp(
        (2.0 * (ch // 2).astype(jnp.float32)) * (-math.log(10000.0) / D)
    ).reshape(1, D)
    odd = (ch % 2).astype(jnp.float32).reshape(1, D)

    # Tile selection: keep 2x(in)+2x(out) x-buffers plus 2 pe buffers under a
    # conservative fraction of the scoped VMEM limit.
    budget = (_VMEM_LIMIT_BYTES * 3) // 4
    pt = _row_tile(L, row_tile_hint, 2 * D * itemsize, budget // 4)
    pe_buf_bytes = 2 * min(pt, L) * D * itemsize
    xt = _row_tile(rows, row_tile_hint, 4 * D * itemsize,
                   max(budget - pe_buf_bytes, budget // 4))

    n_x = pl.cdiv(rows, xt)
    n_pe = pl.cdiv(L, pt)
    grid_n = max(n_x, n_pe)

    def block_map(nb):
        if nb >= grid_n:
            return lambda i: (i, 0)
        last = nb - 1
        return lambda i: (jnp.minimum(i, last), 0)

    x_map = block_map(n_x)
    pe_map = block_map(n_pe)
    const_map = lambda i: (0, 0)  # resident channel tables

    # "parallel" is only safe when every output block is written exactly once
    # by its own grid step (no clamping / block residency across steps).
    semantics = "parallel" if (n_x == grid_n and n_pe == grid_n) else "arbitrary"

    x2 = x.reshape(rows, D)
    out2, pe = pl.pallas_call(
        functools.partial(_fused_kernel, xscale=xscale, seq_len=T,
                          pe_tile=pt, n_x=n_x, n_pe=n_pe, grid_n=grid_n),
        out_shape=(jax.ShapeDtypeStruct((rows, D), x.dtype),
                   jax.ShapeDtypeStruct((L, D), x.dtype)),
        grid=(grid_n,),
        in_specs=[pl.BlockSpec((1, D), const_map),    # inv_freq
                  pl.BlockSpec((1, D), const_map),    # odd-channel mask
                  pl.BlockSpec((xt, D), x_map)],      # x rows
        out_specs=(pl.BlockSpec((xt, D), x_map),      # scaled x rows
                   pl.BlockSpec((pt, D), pe_map)),    # pe rows
        # In-place scale when the caller donates x (reshape stays a bitcast);
        # otherwise XLA inserts a protective copy and semantics are unchanged.
        input_output_aliases={2: 0},
        compiler_params=pltpu.CompilerParams(
            dimension_semantics=(semantics,),
            vmem_limit_bytes=_VMEM_LIMIT_BYTES,
        ),
    )(inv_freq, odd, x2)

    return out2.reshape(B, T, D), pe[None]  # (B, T, D), (1, 2T-1, D)


def _reference(x: jax.Array, d_model: int):
    """Pure-JAX reference mirroring the PyTorch module (eval mode)."""
    B, T, D = x.shape
    xscale = math.sqrt(d_model)
    pos = jnp.arange(T - 1, -T, -1, dtype=jnp.float32)[:, None]      # T-1 .. -(T-1)
    div = jnp.exp(
        jnp.arange(0, D, 2, dtype=jnp.float32) * (-math.log(10000.0) / D)
    )
    ang = pos * div[None, :]
    pe = jnp.zeros((2 * T - 1, D), jnp.float32)
    pe = pe.at[:, 0::2].set(jnp.sin(ang))
    pe = pe.at[:, 1::2].set(jnp.cos(ang))
    return (x * xscale).astype(x.dtype), pe[None].astype(x.dtype)


def _check(x, d_model, **kw):
    out_x, pos_emb = rel_positional_encoding(x, d_model, **kw)
    jax.block_until_ready(out_x)
    jax.block_until_ready(pos_emb)
    ref_x, ref_pe = _reference(x, d_model)
    assert out_x.shape == x.shape
    assert pos_emb.shape == (1, 2 * x.shape[1] - 1, d_model)
    assert jnp.allclose(out_x, ref_x, atol=1e-5, rtol=1e-5)
    assert jnp.allclose(pos_emb, ref_pe, atol=1e-5, rtol=1e-5)


if __name__ == "__main__":
    d_model = 128          # lane-dense channel dim (multiple of 128)
    batch, time = 2, 8
    key = jax.random.PRNGKey(0)
    x = jax.random.normal(key, (batch, time, d_model), dtype=jnp.float32)

    # Run 1: default tiling (single fused grid step at this small size).
    _check(x, d_model)

    # Run 2: multi-step grid with equal x/pe block counts ("parallel" path)
    # and a ragged, masked last pe tile.
    _check(x, d_model, row_tile_hint=8)

    # Run 3: fewer x blocks than pe blocks (x block index clamps, resident
    # output, gated scale body) — exercises the "arbitrary" fused path.
    _check(x[:1], d_model, row_tile_hint=8)

    # Run 4: more x blocks than pe blocks (pe block index clamps).
    x4 = jnp.concatenate([x, x], axis=0)          # (4, 8, 128)
    _check(x4, d_model, row_tile_hint=8)

    print("KERNEL_OK")
</pallas_src>

<mosaic_0001>
module attributes {stable_mosaic.version = 11 : i64} {
  func.func @_fused_kernel(%arg0: i32, %arg1: memref<1x128xf32, #tpu.memory_space<vmem>>, %arg2: memref<1x128xf32, #tpu.memory_space<vmem>>, %arg3: memref<16x128xf32, #tpu.memory_space<vmem>>, %arg4: memref<16x128xf32, #tpu.memory_space<vmem>>, %arg5: memref<15x128xf32, #tpu.memory_space<vmem>>) attributes {dimension_semantics = [#tpu.dimension_semantics<parallel>], iteration_bounds = array<i64: 1>, scalar_prefetch = 0 : i64, scratch_operands = 0 : i64, tpu.core_type = #tpu.core_type<tc>, window_params = [{pipeline_mode = #tpu.pipeline_mode<synchronous>, transform_indices = @transform_0, window_bounds = array<i64: 1, 128>}, {pipeline_mode = #tpu.pipeline_mode<synchronous>, transform_indices = @transform_1, window_bounds = array<i64: 1, 128>}, {transform_indices = @transform_2, window_bounds = array<i64: 16, 128>}, {transform_indices = @transform_3, window_bounds = array<i64: 16, 128>}, {transform_indices = @transform_4, window_bounds = array<i64: 15, 128>}]} {
    %c0 = arith.constant 0 : index
    %c0_0 = arith.constant 0 : index
    %0 = vector.load %arg3[%c0, %c0_0] : memref<16x128xf32, #tpu.memory_space<vmem>>, vector<16x128xf32>
    %cst = arith.constant 11.3137083 : f32
    %1 = vector.broadcast %cst : f32 to vector<16x128xf32>
    %2 = arith.mulf %0, %1 : vector<16x128xf32>
    %c0_1 = arith.constant 0 : index
    %c0_2 = arith.constant 0 : index
    %3 = vector.load %arg4[%c0_1, %c0_2] : memref<16x128xf32, #tpu.memory_space<vmem>>, vector<16x128xf32>
    tpu.vector_store %arg4[%c0_1, %c0_2], %2 {strides = array<i32>} : memref<16x128xf32, #tpu.memory_space<vmem>>, vector<16x128xf32>,
    %c15_i32 = arith.constant 15 : i32
    %4 = arith.muli %arg0, %c15_i32 : i32
    %5 = arith.sitofp %4 : i32 to f32
    %6 = tpu.iota {dimensions = array<i32: 0>} : vector<15x1xi32>
    %7 = arith.sitofp %6 : vector<15x1xi32> to vector<15x1xf32>
    %cst_3 = arith.constant 7.000000e+00 : f32
    %8 = arith.subf %cst_3, %5 : f32
    %9 = vector.broadcast %8 : f32 to vector<15x1xf32>
    %10 = arith.subf %9, %7 : vector<15x1xf32>
    %c0_4 = arith.constant 0 : index
    %c0_5 = arith.constant 0 : index
    %11 = vector.load %arg1[%c0_4, %c0_5] : memref<1x128xf32, #tpu.memory_space<vmem>>, vector<1x128xf32>
    %12 = vector.broadcast %10 : vector<15x1xf32> to vector<15x128xf32>
    %13 = vector.broadcast %11 : vector<1x128xf32> to vector<15x128xf32>
    %14 = arith.mulf %12, %13 : vector<15x128xf32>
    %c0_6 = arith.constant 0 : index
    %c0_7 = arith.constant 0 : index
    %15 = vector.load %arg2[%c0_6, %c0_7] : memref<1x128xf32, #tpu.memory_space<vmem>>, vector<1x128xf32>
    %cst_8 = arith.constant 0.000000e+00 : f32
    %16 = vector.broadcast %cst_8 : f32 to vector<1x128xf32>
    %17 = arith.cmpf one, %15, %16 : vector<1x128xf32>
    %18 = math.cos %14 : vector<15x128xf32>
    %19 = math.sin %14 : vector<15x128xf32>
    %20 = vector.shape_cast %17 : vector<1x128xi1> to vector<1x128xi1>
    %21 = vector.broadcast %20 : vector<1x128xi1> to vector<15x128xi1>
    %22 = arith.select %21, %18, %19 : vector<15x128xi1>, vector<15x128xf32>
    %c0_9 = arith.constant 0 : index
    %c0_10 = arith.constant 0 : index
    %23 = vector.load %arg5[%c0_9, %c0_10] : memref<15x128xf32, #tpu.memory_space<vmem>>, vector<15x128xf32>
    tpu.vector_store %arg5[%c0_9, %c0_10], %22 {strides = array<i32>} : memref<15x128xf32, #tpu.memory_space<vmem>>, vector<15x128xf32>,
    return
  }
  func.func @transform_0(%arg0: i32) -> (i32, i32) {
    %c0_i32 = arith.constant 0 : i32
    %c0_i32_0 = arith.constant 0 : i32
    %c0_i32_1 = arith.constant 0 : i32
    return %c0_i32, %c0_i32_0 : i32, i32
  }
  func.func @transform_1(%arg0: i32) -> (i32, i32) {
    %c0_i32 = arith.constant 0 : i32
    %c0_i32_0 = arith.constant 0 : i32
    %c0_i32_1 = arith.constant 0 : i32
    return %c0_i32, %c0_i32_0 : i32, i32
  }
  func.func @transform_2(%arg0: i32) -> (i32, i32) {
    %c0_i32 = arith.constant 0 : i32
    %c0_i32_0 = arith.constant 0 : i32
    return %arg0, %c0_i32 : i32, i32
  }
  func.func @transform_3(%arg0: i32) -> (i32, i32) {
    %c0_i32 = arith.constant 0 : i32
    %c0_i32_0 = arith.constant 0 : i32
    return %arg0, %c0_i32 : i32, i32
  }
  func.func @transform_4(%arg0: i32) -> (i32, i32) {
    %c0_i32 = arith.constant 0 : i32
    %c0_i32_0 = arith.constant 0 : i32
    return %arg0, %c0_i32 : i32, i32
  }
}

</mosaic_0001>

<llo_original>
// kernel: tpu_custom_call.1
$region0: #{tpu_custom_call.1}
  #allocation0 [shape = 'u32[]', space=smem, size = 0x4, offset = 0x4, fixed_abs, tag = 'smem constant byte address 0x4 - core index']
  #allocation1 [shape = 'u32[144,128]{1,0:T(1,128)}', space=vmem, size = 0x12000, scoped, tag = 'internal scratch']
  %s0 = inlined_call_operand.vmem [shape: f32[1,128], index: 0, kind: input, shape index: {}]
  %s1 = inlined_call_operand.vmem [shape: f32[1,128], index: 1, kind: input, shape index: {}]
  %s2 = inlined_call_operand.hbm [shape: f32[16,128], index: 2, kind: input, shape index: {}, may-alias: {2,3}]
  %s3 = inlined_call_operand.hbm [shape: f32[16,128], index: 3, kind: output, shape index: {0}, may-alias: {2,3}]
  %s4 = inlined_call_operand.hbm [shape: f32[15,128], index: 4, kind: output, shape index: {1}]
  %5 = xla_tuple %s3, %s4
  %s6 = sld [smem:[#allocation0]]
  $region34: #{tpu_custom_call.1} parent=0
    _
  %s8 = ssub.s32 1, %s6
  %s9 = scalar_select 0, %s8, %s6
  $region1: #{tpu_custom_call.1} parent=0
    #allocation2 [shape = 'u8[8192]{0}', space=vmem, size = 0x2000, scoped, tag = 'input window, operand 2, single buffered']
    #allocation3 [shape = 's32[1]{0}', space=sflag, size = 0x4, scoped, tag = 'scoped memory for tpu_custom_call.1']
    #allocation4 [shape = 's32[1]{0}', space=sflag, size = 0x4, scoped, tag = 'scoped memory for tpu_custom_call.1']
    #allocation5 [shape = 'u8[8192]{0}', space=vmem, size = 0x2000, scoped, tag = 'output window, operand 0, single buffered']
    #allocation6 [shape = 'u8[8192]{0}', space=vmem, size = 0x2000, scoped, tag = 'output window, operand 1, single buffered']
    #allocation7 [shape = 's32[1]{0}', space=sflag, size = 0x4, scoped, tag = 'scoped memory for tpu_custom_call.1']
    %10 = vsyncpa [#allocation3], 0
    %11 = vsyncpa [#allocation4], 0
    %12 = vsyncpa [#allocation7], 0
    // Predicated region
    $region2: #{tpu_custom_call.1} parent=1 // pred_check
      _
    $region3: #{tpu_custom_call.1} parent=1 // pred_check_branch
      %14 = sbr.rel (0) target = $region5
    $region4: #{tpu_custom_call.1} parent=1 // pred_region
      _
    $region5: #{tpu_custom_call.1} parent=1 // pred_fallthru
      _
    // Predicated region
    $region6: #{tpu_custom_call.1} parent=1 // pred_check
      _
    $region7: #{tpu_custom_call.1} parent=1 // pred_check_branch
      %16 = sbr.rel (0) target = $region9
    $region8: #{tpu_custom_call.1} parent=1 // pred_region
      _
    $region9: #{tpu_custom_call.1} parent=1 // pred_fallthru
      _
    // Predicated region
    $region10: #{tpu_custom_call.1} parent=1 // pred_check
      _
    $region11: #{tpu_custom_call.1} parent=1 // pred_check_branch
      %18 = sbr.rel (0) target = $region13
    $region12: #{tpu_custom_call.1} parent=1 // pred_region
      %s20 = ssub.s32 256, 256
      %21 = vsyncadd [#allocation3], %s20
      %s22 = sshll.u32 [#allocation2], 4
      %s23 = int_to_ptr.vmem [resolvable:$true] %s22
      %28 = dma.hbm_to_vmem [thread:$0]  %s2, 256, %s23, [#allocation3], 128, 128, 8
    $region13: #{tpu_custom_call.1} parent=1 // pred_fallthru
      _
    // Predicated region
    $region14: #{tpu_custom_call.1} parent=1 // pred_check
      _
    $region15: #{tpu_custom_call.1} parent=1 // pred_check_branch
      %30 = sbr.rel (0) target = $region17
    $region16: #{tpu_custom_call.1} parent=1 // pred_region
      %31 = dma.done [#allocation3], 256
    $region17: #{tpu_custom_call.1} parent=1 // pred_fallthru
      _
    %v32 = vld [vmem:[#allocation2] sm:$0xff]
    %v33 = vld [vmem:[#allocation2 + $0x8] sm:$0xff]
    %v34 = vmul.f32 %v32, 11.313708
    %v35 = vmul.f32 %v33, 11.313708
    %36 = vst [vmem:[#allocation5] sm:$0xff] %v34
    %37 = vst [vmem:[#allocation5 + $0x8] sm:$0xff] %v35
    %s38 = smul.u32 0, 15
    %s39 = scvt.s32.f32 %s38
    %v40 = vlaneseq
    %v41 = vshrl.u32 %v40, 7
    %v42 = vadd.s32 %v41, 8
    %v43 = vcvt.s32.f32 %v41
    %v44 = vcvt.s32.f32 %v42
    %s45 = ssub.f32 7.0, %s39
    %v46 = vstv %s45
    %v47 = vsub.f32 %v46, %v43
    %v48 = vsub.f32 %v46, %v44
    %v49 = vld [vmem:[%s0] sm:$0x1]
    %v51 = vlaneseq
    %v52 = vshrl.u32 %v51, 7
    %v53 = vsub.s32 0, %v52
    %v54 = vrot.slane %v49, %v53
    %v56 = vmul.f32 %v47, %v54
    %v57 = vmul.f32 %v48, %v54
    %v58 = vld [vmem:[%s1] sm:$0x1]
    %vm59 = vcmp.ne.f32.partialorder %v58, 0.0
    %v60 = vand.u32 2147483647, %v56
    %vm61 = vcmp.le.f32.partialorder %v60, 0.7853982
    %vm62 = vcmp.lt.s32.totalorder %v56, 0
    %v63 = vand.u32 %v56, 2139095040
    %v64 = vshrl.u32 %v63, 23
    %v65 = vsub.s32 %v64, 127
    %v66 = vand.u32 2147483647, %v56
    %v67 = vand.u32 %v66, 8388607
    %v68 = vor.u32 %v67, 8388608
    %v69 = vsub.s32 0, %v68
    %v70 = vadd.s32 %v65, 1
    %vm71 = vcmp.gt.s32.totalorder %v70, 0
    %v72 = vsel %vm71, %v70, 0
    %v73 = vshrl.u32 %v72, 5
    %v74 = vand.u32 %v72, 31
    %v75 = vsub.s32 32, %v74
    %v76 = vshrl.u32 683565275, %v75
    %v77 = vshll.u32 683565275, %v74
    %v78 = vshrl.u32 2475754826, %v75
    %v79 = vor.u32 %v77, %v78
    %v80 = vshll.u32 2475754826, %v74
    %v81 = vshrl.u32 2131351028, %v75
    %v82 = vor.u32 %v80, %v81
    %v83 = vshll.u32 2131351028, %v74
    %v84 = vshrl.u32 2102212464, %v75
    %v85 = vor.u32 %v83, %v84
    %v86 = vshll.u32 2102212464, %v74
    %v87 = vshrl.u32 920167782, %v75
    %v88 = vor.u32 %v86, %v87
    %v89 = vshll.u32 920167782, %v74
    %v90 = vshrl.u32 1326507024, %v75
    %v91 = vor.u32 %v89, %v90
    %vm92 = vcmp.lt.s32.totalorder %v73, 1
    %vm93 = vcmp.lt.s32.totalorder %v73, 2
    %vm94 = vcmp.lt.s32.totalorder %v73, 3
    %vm95 = vcmp.lt.s32.totalorder %v73, 4
    %v96 = vsel %vm92, %v76, %v79
    %v97 = vsel %vm95, %v85, 2102212464
    %v98 = vsel %vm94, %v82, %v97
    %v99 = vsel %vm93, %v96, %v98
    %v100 = vsel %vm92, %v79, %v82
    %v101 = vsel %vm95, %v88, 920167782
    %v102 = vsel %vm94, %v85, %v101
    %v103 = vsel %vm93, %v100, %v102
    %v104 = vsel %vm92, %v82, %v85
    %v105 = vsel %vm95, %v91, 1326507024
    %v106 = vsel %vm94, %v88, %v105
    %v107 = vsel %vm93, %v104, %v106
    %v108 = vshll.u32 %v68, 8
    %v109 = vmul.u32.u64.compose %v108, %v107
    %v110 = vextract.low.u32 %v109
    %v111 = vextract.high.u32 %v109
    %v112 = vmul.u32.u64.compose %v108, %v103
    %v113 = vextract.low.u32 %v112
    %v114 = vextract.high.u32 %v112
    %v115 = vmul.u32 %v108, %v99
    %v116 = vadd.s32 %v111, %v113
    %vm117 = vc.u32 %v111, %v113
    %v118 = vadd.s32 %v114, 1
    %v119 = vsel %vm117, %v118, %v114
    %v120 = vadd.s32 %v115, %v119
    %v121 = vadd.s32 %v120, 536870912
    %v122 = vshrl.u32 %v121, 30
    %v123 = vshll.u32 %v122, 30
    %v124 = vsub.s32 %v120, %v123
    %vm125 = vcmp.lt.s32.totalorder %v124, 0
    %v126 = vsub.s32 0, %v124
    %v127 = vsel %vm125, %v126, %v124
    %v128 = vclz %v127
    %v129 = vsub.s32 %v128, 2
    %vm130 = vcmp.gt.s32.totalorder 0, %v129
    %v131 = vsel %vm130, 0, %v129
    %v132 = vsub.s32 32, %v131
    %v133 = vshll.u32 %v124, %v131
    %v134 = vshrl.u32 %v116, %v132
    %v135 = vor.u32 %v133, %v134
    %v136 = vsub.s32 4294967266, %v131
    %v137 = vadd.s32 %v136, 127
    %v138 = vshll.u32 %v137, 23
    %v139 = vor.u32 4788187, %v138
    %v140 = vand.u32 2147483647, %v139
    %v142 = vcvt.s32.f32 %v135
    %v143 = vmul.f32 %v142, %v140
    %v144 = vxor.u32 %v143, 2147483648
    %v145 = vsel %vm62, %v144, %v143
    %v146 = vsub.s32 4, %v122
    %v147 = vsel %vm62, %v146, %v122
    %v148 = vsel %vm61, %v56, %v145
    %v149 = vsel %vm61, 0, %v147
    %v150 = vcosq.f32.pop %v148
    %v151 = vsinq.f32.pop %v148
    %vm152 = vweird.f32 %v56
    %v153 = vand.u32 %v149, 3
    %vm154 = vcmp.lt.s32.totalorder %v153, 2
    %vm155 = vcmp.eq.s32.totalorder %v153, 0
    %v156 = vxor.u32 %v151, 2147483648
    %v157 = vsel %vm155, %v150, %v156
    %vm158 = vcmp.eq.s32.totalorder %v153, 2
    %v159 = vxor.u32 %v150, 2147483648
    %v160 = vsel %vm158, %v159, %v151
    %v161 = vsel %vm154, %v157, %v160
    %v162 = vsel %vm152, nan, %v161
    %v163 = vand.u32 2147483647, %v57
    %vm164 = vcmp.le.f32.partialorder %v163, 0.7853982
    %vm165 = vcmp.lt.s32.totalorder %v57, 0
    %v166 = vand.u32 %v57, 2139095040
    %v167 = vshrl.u32 %v166, 23
    %v168 = vsub.s32 %v167, 127
    %v169 = vand.u32 2147483647, %v57
    %v170 = vand.u32 %v169, 8388607
    %v171 = vor.u32 %v170, 8388608
    %v172 = vsub.s32 0, %v171
    %v173 = vadd.s32 %v168, 1
    %vm174 = vcmp.gt.s32.totalorder %v173, 0
    %v175 = vsel %vm174, %v173, 0
    %v176 = vshrl.u32 %v175, 5
    %v177 = vand.u32 %v175, 31
    %v178 = vsub.s32 32, %v177
    %v179 = vshrl.u32 683565275, %v178
    %v180 = vshll.u32 683565275, %v177
    %v181 = vshrl.u32 2475754826, %v178
    %v182 = vor.u32 %v180, %v181
    %v183 = vshll.u32 2475754826, %v177
    %v184 = vshrl.u32 2131351028, %v178
    %v185 = vor.u32 %v183, %v184
    %v186 = vshll.u32 2131351028, %v177
    %v187 = vshrl.u32 2102212464, %v178
    %v188 = vor.u32 %v186, %v187
    %v189 = vshll.u32 2102212464, %v177
    %v190 = vshrl.u32 920167782, %v178
    %v191 = vor.u32 %v189, %v190
    %v192 = vshll.u32 920167782, %v177
    %v193 = vshrl.u32 1326507024, %v178
    %v194 = vor.u32 %v192, %v193
    %vm195 = vcmp.lt.s32.totalorder %v176, 1
    %vm196 = vcmp.lt.s32.totalorder %v176, 2
    %vm197 = vcmp.lt.s32.totalorder %v176, 3
    %vm198 = vcmp.lt.s32.totalorder %v176, 4
    %v199 = vsel %vm195, %v179, %v182
    %v200 = vsel %vm198, %v188, 2102212464
    %v201 = vsel %vm197, %v185, %v200
    %v202 = vsel %vm196, %v199, %v201
    %v203 = vsel %vm195, %v182, %v185
    %v204 = vsel %vm198, %v191, 920167782
    %v205 = vsel %vm197, %v188, %v204
    %v206 = vsel %vm196, %v203, %v205
    %v207 = vsel %vm195, %v185, %v188
    %v208 = vsel %vm198, %v194, 1326507024
    %v209 = vsel %vm197, %v191, %v208
    %v210 = vsel %vm196, %v207, %v209
    %v211 = vshll.u32 %v171, 8
    %v212 = vmul.u32.u64.compose %v211, %v210
    %v213 = vextract.low.u32 %v212
    %v214 = vextract.high.u32 %v212
    %v215 = vmul.u32.u64.compose %v211, %v206
    %v216 = vextract.low.u32 %v215
    %v217 = vextract.high.u32 %v215
    %v218 = vmul.u32 %v211, %v202
    %v219 = vadd.s32 %v214, %v216
    %vm220 = vc.u32 %v214, %v216
    %v221 = vadd.s32 %v217, 1
    %v222 = vsel %vm220, %v221, %v217
    %v223 = vadd.s32 %v218, %v222
    %v224 = vadd.s32 %v223, 536870912
    %v225 = vshrl.u32 %v224, 30
    %v226 = vshll.u32 %v225, 30
    %v227 = vsub.s32 %v223, %v226
    %vm228 = vcmp.lt.s32.totalorder %v227, 0
    %v229 = vsub.s32 0, %v227
    %v230 = vsel %vm228, %v229, %v227
    %v231 = vclz %v230
    %v232 = vsub.s32 %v231, 2
    %vm233 = vcmp.gt.s32.totalorder 0, %v232
    %v234 = vsel %vm233, 0, %v232
    %v235 = vsub.s32 32, %v234
    %v236 = vshll.u32 %v227, %v234
    %v237 = vshrl.u32 %v219, %v235
    %v238 = vor.u32 %v236, %v237
    %v239 = vsub.s32 4294967266, %v234
    %v240 = vadd.s32 %v239, 127
    %v241 = vshll.u32 %v240, 23
    %v242 = vor.u32 4788187, %v241
    %v243 = vand.u32 2147483647, %v242
    %v245 = vcvt.s32.f32 %v238
    %v246 = vmul.f32 %v245, %v243
    %v247 = vxor.u32 %v246, 2147483648
    %v248 = vsel %vm165, %v247, %v246
    %v249 = vsub.s32 4, %v225
    %v250 = vsel %vm165, %v249, %v225
    %v251 = vsel %vm164, %v57, %v248
    %v252 = vsel %vm164, 0, %v250
    %v253 = vcosq.f32.pop %v251
    %v254 = vsinq.f32.pop %v251
    %vm255 = vweird.f32 %v57
    %v256 = vand.u32 %v252, 3
    %vm257 = vcmp.lt.s32.totalorder %v256, 2
    %vm258 = vcmp.eq.s32.totalorder %v256, 0
    %v259 = vxor.u32 %v254, 2147483648
    %v260 = vsel %vm258, %v253, %v259
    %vm261 = vcmp.eq.s32.totalorder %v256, 2
    %v262 = vxor.u32 %v253, 2147483648
    %v263 = vsel %vm261, %v262, %v254
    %v264 = vsel %vm257, %v260, %v263
    %v265 = vsel %vm255, nan, %v264
    %v266 = vand.u32 2147483647, %v56
    %vm267 = vcmp.le.f32.partialorder %v266, 0.7853982
    %vm268 = vcmp.lt.s32.totalorder %v56, 0
    %v269 = vand.u32 %v56, 2139095040
    %v270 = vshrl.u32 %v269, 23
    %v271 = vsub.s32 %v270, 127
    %v272 = vand.u32 2147483647, %v56
    %v273 = vand.u32 %v272, 8388607
    %v274 = vor.u32 %v273, 8388608
    %v275 = vsub.s32 0, %v274
    %v276 = vadd.s32 %v271, 1
    %vm277 = vcmp.gt.s32.totalorder %v276, 0
    %v278 = vsel %vm277, %v276, 0
    %v279 = vshrl.u32 %v278, 5
    %v280 = vand.u32 %v278, 31
    %v281 = vsub.s32 32, %v280
    %v282 = vshrl.u32 683565275, %v281
    %v283 = vshll.u32 683565275, %v280
    %v284 = vshrl.u32 2475754826, %v281
    %v285 = vor.u32 %v283, %v284
    %v286 = vshll.u32 2475754826, %v280
    %v287 = vshrl.u32 2131351028, %v281
    %v288 = vor.u32 %v286, %v287
    %v289 = vshll.u32 2131351028, %v280
    %v290 = vshrl.u32 2102212464, %v281
    %v291 = vor.u32 %v289, %v290
    %v292 = vshll.u32 2102212464, %v280
    %v293 = vshrl.u32 920167782, %v281
    %v294 = vor.u32 %v292, %v293
    %v295 = vshll.u32 920167782, %v280
    %v296 = vshrl.u32 1326507024, %v281
    %v297 = vor.u32 %v295, %v296
    %vm298 = vcmp.lt.s32.totalorder %v279, 1
    %vm299 = vcmp.lt.s32.totalorder %v279, 2
    %vm300 = vcmp.lt.s32.totalorder %v279, 3
    %vm301 = vcmp.lt.s32.totalorder %v279, 4
    %v302 = vsel %vm298, %v282, %v285
    %v303 = vsel %vm301, %v291, 2102212464
    %v304 = vsel %vm300, %v288, %v303
    %v305 = vsel %vm299, %v302, %v304
    %v306 = vsel %vm298, %v285, %v288
    %v307 = vsel %vm301, %v294, 920167782
    %v308 = vsel %vm300, %v291, %v307
    %v309 = vsel %vm299, %v306, %v308
    %v310 = vsel %vm298, %v288, %v291
    %v311 = vsel %vm301, %v297, 1326507024
    %v312 = vsel %vm300, %v294, %v311
    %v313 = vsel %vm299, %v310, %v312
    %v314 = vshll.u32 %v274, 8
    %v315 = vmul.u32.u64.compose %v314, %v313
    %v316 = vextract.low.u32 %v315
    %v317 = vextract.high.u32 %v315
    %v318 = vmul.u32.u64.compose %v314, %v309
    %v319 = vextract.low.u32 %v318
    %v320 = vextract.high.u32 %v318
    %v321 = vmul.u32 %v314, %v305
    %v322 = vadd.s32 %v317, %v319
    %vm323 = vc.u32 %v317, %v319
    %v324 = vadd.s32 %v320, 1
    %v325 = vsel %vm323, %v324, %v320
    %v326 = vadd.s32 %v321, %v325
    %v327 = vadd.s32 %v326, 536870912
    %v328 = vshrl.u32 %v327, 30
    %v329 = vshll.u32 %v328, 30
    %v330 = vsub.s32 %v326, %v329
    %vm331 = vcmp.lt.s32.totalorder %v330, 0
    %v332 = vsub.s32 0, %v330
    %v333 = vsel %vm331, %v332, %v330
    %v334 = vclz %v333
    %v335 = vsub.s32 %v334, 2
    %vm336 = vcmp.gt.s32.totalorder 0, %v335
    %v337 = vsel %vm336, 0, %v335
    %v338 = vsub.s32 32, %v337
    %v339 = vshll.u32 %v330, %v337
    %v340 = vshrl.u32 %v322, %v338
    %v341 = vor.u32 %v339, %v340
    %v342 = vsub.s32 4294967266, %v337
    %v343 = vadd.s32 %v342, 127
    %v344 = vshll.u32 %v343, 23
    %v345 = vor.u32 4788187, %v344
    %v346 = vand.u32 2147483647, %v345
    %v348 = vcvt.s32.f32 %v341
    %v349 = vmul.f32 %v348, %v346
    %v350 = vxor.u32 %v349, 2147483648
    %v351 = vsel %vm268, %v350, %v349
    %v352 = vsub.s32 4, %v328
    %v353 = vsel %vm268, %v352, %v328
    %v354 = vsel %vm267, %v56, %v351
    %v355 = vsel %vm267, 0, %v353
    %v356 = vcosq.f32.pop %v354
    %v357 = vsinq.f32.pop %v354
    %vm358 = vweird.f32 %v56
    %v359 = vadd.s32 %v355, 3
    %v360 = vand.u32 %v359, 3
    %vm361 = vcmp.lt.s32.totalorder %v360, 2
    %vm362 = vcmp.eq.s32.totalorder %v360, 0
    %v363 = vxor.u32 %v357, 2147483648
    %v364 = vsel %vm362, %v356, %v363
    %vm365 = vcmp.eq.s32.totalorder %v360, 2
    %v366 = vxor.u32 %v356, 2147483648
    %v367 = vsel %vm365, %v366, %v357
    %v368 = vsel %vm361, %v364, %v367
    %v369 = vsel %vm358, nan, %v368
    %v370 = vand.u32 2147483647, %v57
    %vm371 = vcmp.le.f32.partialorder %v370, 0.7853982
    %vm372 = vcmp.lt.s32.totalorder %v57, 0
    %v373 = vand.u32 %v57, 2139095040
    %v374 = vshrl.u32 %v373, 23
    %v375 = vsub.s32 %v374, 127
    %v376 = vand.u32 2147483647, %v57
    %v377 = vand.u32 %v376, 8388607
    %v378 = vor.u32 %v377, 8388608
    %v379 = vsub.s32 0, %v378
    %v380 = vadd.s32 %v375, 1
    %vm381 = vcmp.gt.s32.totalorder %v380, 0
    %v382 = vsel %vm381, %v380, 0
    %v383 = vshrl.u32 %v382, 5
    %v384 = vand.u32 %v382, 31
    %v385 = vsub.s32 32, %v384
    %v386 = vshrl.u32 683565275, %v385
    %v387 = vshll.u32 683565275, %v384
    %v388 = vshrl.u32 2475754826, %v385
    %v389 = vor.u32 %v387, %v388
    %v390 = vshll.u32 2475754826, %v384
    %v391 = vshrl.u32 2131351028, %v385
    %v392 = vor.u32 %v390, %v391
    %v393 = vshll.u32 2131351028, %v384
    %v394 = vshrl.u32 2102212464, %v385
    %v395 = vor.u32 %v393, %v394
    %v396 = vshll.u32 2102212464, %v384
    %v397 = vshrl.u32 920167782, %v385
    %v398 = vor.u32 %v396, %v397
    %v399 = vshll.u32 920167782, %v384
    %v400 = vshrl.u32 1326507024, %v385
    %v401 = vor.u32 %v399, %v400
    %vm402 = vcmp.lt.s32.totalorder %v383, 1
    %vm403 = vcmp.lt.s32.totalorder %v383, 2
    %vm404 = vcmp.lt.s32.totalorder %v383, 3
    %vm405 = vcmp.lt.s32.totalorder %v383, 4
    %v406 = vsel %vm402, %v386, %v389
    %v407 = vsel %vm405, %v395, 2102212464
    %v408 = vsel %vm404, %v392, %v407
    %v409 = vsel %vm403, %v406, %v408
    %v410 = vsel %vm402, %v389, %v392
    %v411 = vsel %vm405, %v398, 920167782
    %v412 = vsel %vm404, %v395, %v411
    %v413 = vsel %vm403, %v410, %v412
    %v414 = vsel %vm402, %v392, %v395
    %v415 = vsel %vm405, %v401, 1326507024
    %v416 = vsel %vm404, %v398, %v415
    %v417 = vsel %vm403, %v414, %v416
    %v418 = vshll.u32 %v378, 8
    %v419 = vmul.u32.u64.compose %v418, %v417
    %v420 = vextract.low.u32 %v419
    %v421 = vextract.high.u32 %v419
    %v422 = vmul.u32.u64.compose %v418, %v413
    %v423 = vextract.low.u32 %v422
    %v424 = vextract.high.u32 %v422
    %v425 = vmul.u32 %v418, %v409
    %v426 = vadd.s32 %v421, %v423
    %vm427 = vc.u32 %v421, %v423
    %v428 = vadd.s32 %v424, 1
    %v429 = vsel %vm427, %v428, %v424
    %v430 = vadd.s32 %v425, %v429
    %v431 = vadd.s32 %v430, 536870912
    %v432 = vshrl.u32 %v431, 30
    %v433 = vshll.u32 %v432, 30
    %v434 = vsub.s32 %v430, %v433
    %vm435 = vcmp.lt.s32.totalorder %v434, 0
    %v436 = vsub.s32 0, %v434
    %v437 = vsel %vm435, %v436, %v434
    %v438 = vclz %v437
    %v439 = vsub.s32 %v438, 2
    %vm440 = vcmp.gt.s32.totalorder 0, %v439
    %v441 = vsel %vm440, 0, %v439
    %v442 = vsub.s32 32, %v441
    %v443 = vshll.u32 %v434, %v441
    %v444 = vshrl.u32 %v426, %v442
    %v445 = vor.u32 %v443, %v444
    %v446 = vsub.s32 4294967266, %v441
    %v447 = vadd.s32 %v446, 127
    %v448 = vshll.u32 %v447, 23
    %v449 = vor.u32 4788187, %v448
    %v450 = vand.u32 2147483647, %v449
    %v452 = vcvt.s32.f32 %v445
    %v453 = vmul.f32 %v452, %v450
    %v454 = vxor.u32 %v453, 2147483648
    %v455 = vsel %vm372, %v454, %v453
    %v456 = vsub.s32 4, %v432
    %v457 = vsel %vm372, %v456, %v432
    %v458 = vsel %vm371, %v57, %v455
    %v459 = vsel %vm371, 0, %v457
    %v460 = vcosq.f32.pop %v458
    %v461 = vsinq.f32.pop %v458
    %vm462 = vweird.f32 %v57
    %v463 = vadd.s32 %v459, 3
    %v464 = vand.u32 %v463, 3
    %vm465 = vcmp.lt.s32.totalorder %v464, 2
    %vm466 = vcmp.eq.s32.totalorder %v464, 0
    %v467 = vxor.u32 %v461, 2147483648
    %v468 = vsel %vm466, %v460, %v467
    %vm469 = vcmp.eq.s32.totalorder %v464, 2
    %v470 = vxor.u32 %v460, 2147483648
    %v471 = vsel %vm469, %v470, %v461
    %v472 = vsel %vm465, %v468, %v471
    %v473 = vsel %vm462, nan, %v472
    %v474 = vsel %vm59, 1, 0
    %v475 = vlaneseq
    %v476 = vshrl.u32 %v475, 7
    %v477 = vsub.s32 0, %v476
    %v478 = vrot.slane %v474, %v477
    %vm479 = vcmp.eq.s32.totalorder %v478, 1
    %v480 = vsel %vm479, %v162, %v369
    %v481 = vsel %vm479, %v265, %v473
    %482 = vst [vmem:[#allocation6] sm:$0xff] %v480
    %483 = vst [vmem:[#allocation6 + $0x8] sm:$0x7f] %v481
    // Predicated region
    $region18: #{tpu_custom_call.1} parent=1 // pred_check
      _
    $region19: #{tpu_custom_call.1} parent=1 // pred_check_branch
      %485 = sbr.rel (0) target = $region21
    $region20: #{tpu_custom_call.1} parent=1 // pred_region
      %s487 = ssub.s32 256, 256
      %488 = vsyncadd [#allocation4], %s487
      %s489 = sshll.u32 [#allocation5], 4
      %s490 = int_to_ptr.vmem [resolvable:$true] %s489
      %495 = dma.vmem_to_hbm [thread:$0]  %s490, 256, %s3, [#allocation4], 128, 128, 8
    $region21: #{tpu_custom_call.1} parent=1 // pred_fallthru
      _
    // Predicated region
    $region22: #{tpu_custom_call.1} parent=1 // pred_check
      _
    $region23: #{tpu_custom_call.1} parent=1 // pred_check_branch
      %497 = sbr.rel (0) target = $region25
    $region24: #{tpu_custom_call.1} parent=1 // pred_region
      %s499 = ssub.s32 256, 256
      %500 = vsyncadd [#allocation7], %s499
      %s501 = sshll.u32 [#allocation6], 4
      %s502 = int_to_ptr.vmem [resolvable:$true] %s501
      %507 = dma.vmem_to_hbm [thread:$0]  %s502, 256, %s4, [#allocation7], 128, 128, 8
    $region25: #{tpu_custom_call.1} parent=1 // pred_fallthru
      _
    // Predicated region
    $region26: #{tpu_custom_call.1} parent=1 // pred_check
      _
    $region27: #{tpu_custom_call.1} parent=1 // pred_check_branch
      %509 = sbr.rel (0) target = $region29
    $region28: #{tpu_custom_call.1} parent=1 // pred_region
      %510 = dma.done [#allocation4], 256
    $region29: #{tpu_custom_call.1} parent=1 // pred_fallthru
      _
    // Predicated region
    $region30: #{tpu_custom_call.1} parent=1 // pred_check
      _
    $region31: #{tpu_custom_call.1} parent=1 // pred_check_branch
      %512 = sbr.rel (0) target = $region33
    $region32: #{tpu_custom_call.1} parent=1 // pred_region
      %513 = dma.done [#allocation7], 256
    $region33: #{tpu_custom_call.1} parent=1 // pred_fallthru
      _
    %514 = vsyncpa [#allocation3], 1
    %515 = vsyncpa [#allocation4], 1
    %516 = vsyncpa [#allocation7], 1

</llo_original>
